<compile_context>
chip_gen: v5e
topology: v5e:2x2
jax: 0.10.0
libtpu: 0.0.40
codegen_flags: <defaults>
</compile_context>

<pallas_src>
from typing import NamedTuple

import jax
import jax.numpy as jnp
from jax import lax
from jax.experimental import pallas as pl
from jax.experimental.pallas import tpu as pltpu


def _round_up(x, m):
    return ((x + m - 1) // m) * m


class DecoderParams(NamedTuple):
    w_t: jax.Array        # (L, V_pad), compute dtype, lane-dense along vocab
    bias2d: jax.Array     # (1, V_pad) float32; padded cols hold float32.min
    vocab_size: int
    tile_v: int


def prepare_decoder_params(weight, bias, *, tile_v=512, mxu_dtype=jnp.bfloat16):
    """One-time (init-time) weight/bias preparation.

    weight: (V, L) — same layout as the tied nn.Embedding / nn.Linear weight.
    bias:   (V,)
    mxu_dtype: MXU operand dtype; bf16 by default (f32 accumulation is kept),
      pass None / jnp.float32 for bit-tight f32 semantics.
    """
    V, L = weight.shape
    tile_v = min(tile_v, _round_up(V, 128))
    tile_v = _round_up(tile_v, 128)
    # Prefer a tile_v that divides V: no vocab padding, no post-call slice copy.
    for tv in range(tile_v, 0, -128):
        if V % tv == 0:
            tile_v = tv
            break
    V_pad = _round_up(V, tile_v)

    compute_dtype = jnp.float32 if mxu_dtype is None else mxu_dtype

    w_t = weight.T                                  # (L, V): lane dim = vocab
    b = bias.astype(jnp.float32)
    if V_pad != V:
        w_t = jnp.pad(w_t, ((0, 0), (0, V_pad - V)))
        # Padded vocab columns get the most-negative finite f32 bias so argmax
        # can never pick them (real logits never approach -3.4e38 for sane
        # inputs; -inf is avoided to keep the max/compare path NaN-free).
        b = jnp.pad(b, (0, V_pad - V),
                    constant_values=jnp.finfo(jnp.float32).min)
    w_t = w_t.astype(compute_dtype)
    return DecoderParams(w_t=w_t, bias2d=b.reshape(1, V_pad),
                         vocab_size=V, tile_v=tile_v)


def _lane_argmax_update(logits, j, max_sc, idx_sc, ids_ref):
    """Online argmax over the vocab grid axis, lane-wise (VPU only) updates.

    max_sc / idx_sc: (tile_m, 128) running per-lane max and earliest column
    index attaining it.  The single cross-lane reduce happens in the epilogue.
    """
    tm, tv = logits.shape
    n_slabs = tv // 128
    lane = lax.broadcasted_iota(jnp.int32, (tm, 128), 1)

    @pl.when(j == 0)
    def _():
        max_sc[...] = jnp.full_like(max_sc, -jnp.inf)
        idx_sc[...] = jnp.zeros_like(idx_sc)

    cur_max = max_sc[...]
    cur_idx = idx_sc[...]
    base = j * tv
    for s in range(n_slabs):                        # static, small (tv/128)
        slab = logits[:, s * 128:(s + 1) * 128]     # (tm, 128)
        slab_idx = lane + (base + s * 128)          # absolute column index
        # Strict '>' keeps the earlier (lower-index) column on exact ties,
        # matching torch.topk / jnp.argmax first-occurrence semantics.
        better = slab > cur_max
        cur_idx = jnp.where(better, slab_idx, cur_idx)
        cur_max = jnp.maximum(cur_max, slab)
    max_sc[...] = cur_max
    idx_sc[...] = cur_idx

    @pl.when(j == pl.num_programs(1) - 1)
    def _():
        # Single XLU reduce per row-tile: global max, then the smallest stored
        # column index among lanes attaining it (preserves first-occurrence).
        gmax = jnp.max(cur_max, axis=-1, keepdims=True)            # (tm, 1)
        big = jnp.int32(2 ** 30)
        gidx = jnp.min(jnp.where(cur_max == gmax, cur_idx, big),
                       axis=-1, keepdims=True)                     # (tm, 1)
        ids_ref[...] = gidx


def _decoder_ids_kernel(x_ref, w_ref, b_ref, ids_ref, max_sc, idx_sc):
    """Argmax-only fast path: dense logits never leave VMEM/vregs."""
    j = pl.program_id(1)
    logits = lax.dot_general(
        x_ref[...], w_ref[...],
        dimension_numbers=(((1,), (0,)), ((), ())),   # (M,L) x (L,V) -> (M,V)
        preferred_element_type=jnp.float32)
    logits = logits + b_ref[...]                      # broadcast (1, tile_v)
    _lane_argmax_update(logits, j, max_sc, idx_sc, ids_ref)


def _decoder_ids_logits_kernel(x_ref, w_ref, b_ref, logits_ref, ids_ref,
                               max_sc, idx_sc):
    """return_logits=True path: also materializes the dense logits."""
    j = pl.program_id(1)
    logits = lax.dot_general(
        x_ref[...], w_ref[...],
        dimension_numbers=(((1,), (0,)), ((), ())),
        preferred_element_type=jnp.float32)
    logits = logits + b_ref[...]
    logits_ref[...] = logits.astype(logits_ref.dtype)
    _lane_argmax_update(logits, j, max_sc, idx_sc, ids_ref)


def _vmem_limit_bytes(tile_m, tile_v, L, x_itemsize, w_itemsize,
                      return_logits, logits_itemsize):
    need = (2 * tile_m * L * x_itemsize          # x block (double buffered)
            + 2 * L * tile_v * w_itemsize        # weight block (double buffered)
            + 2 * 8 * tile_v * 4                 # bias block (8-sublane padded)
            + 2 * tile_m * 128 * 4               # ids out block (lane padded)
            + 2 * tile_m * 128 * 4)              # max/idx scratch
    if return_logits:
        need += 2 * tile_m * tile_v * logits_itemsize
    # 2x safety factor; floor 16 MiB; cap 56 MiB so it always fits v7x (64 MiB).
    return int(min(max(2 * need, 16 * 1024 * 1024), 56 * 1024 * 1024))


def decoder_forward(x0, params: DecoderParams, *, tile_m=256,
                    return_logits=False, logits_dtype=jnp.float32):
    """x0: (B, S, L); params from prepare_decoder_params.

    tile_m: row tile; 256 default.  On v5e/v6e with large M, 512–1024 further
    reduces weight re-streaming (the dominant HBM traffic).
    logits_dtype: set to jnp.bfloat16 to halve the logits writeback when
    return_logits=True.
    """
    B, S, L = x0.shape
    w_t, b2d, V, tile_v = params
    Lw, V_pad = w_t.shape
    assert Lw == L, f"latent mismatch: x has {L}, weight has {Lw}"
    M = B * S

    tile_m = min(tile_m, _round_up(M, 8))        # sublane-aligned
    M_pad = _round_up(M, tile_m)

    x2d = x0.reshape(M, L)
    if M_pad != M:
        x2d = jnp.pad(x2d, ((0, M_pad - M), (0, 0)))   # padded rows discarded
    x2d = x2d.astype(w_t.dtype)                        # MXU operand dtype

    grid = (M_pad // tile_m, V_pad // tile_v)

    in_specs = [
        pl.BlockSpec((tile_m, L), lambda i, j: (i, 0)),    # activations (M,L)
        pl.BlockSpec((L, tile_v), lambda i, j: (0, j)),    # weight (L,V) tile
        pl.BlockSpec((1, tile_v), lambda i, j: (0, j)),    # bias slice
    ]
    scratch_shapes = [
        pltpu.VMEM((tile_m, 128), jnp.float32),   # running per-lane max
        pltpu.VMEM((tile_m, 128), jnp.int32),     # running per-lane argmax col
    ]
    compiler_params = pltpu.CompilerParams(
        dimension_semantics=("parallel", "arbitrary"),
        vmem_limit_bytes=_vmem_limit_bytes(
            tile_m, tile_v, L, x2d.dtype.itemsize, w_t.dtype.itemsize,
            return_logits, jnp.dtype(logits_dtype).itemsize))

    if return_logits:
        kernel = _decoder_ids_logits_kernel
        out_shape = (jax.ShapeDtypeStruct((M_pad, V_pad), logits_dtype),
                     jax.ShapeDtypeStruct((M_pad, 1), jnp.int32))
        out_specs = [pl.BlockSpec((tile_m, tile_v), lambda i, j: (i, j)),
                     pl.BlockSpec((tile_m, 1), lambda i, j: (i, 0))]
    else:
        kernel = _decoder_ids_kernel
        out_shape = jax.ShapeDtypeStruct((M_pad, 1), jnp.int32)
        out_specs = pl.BlockSpec((tile_m, 1), lambda i, j: (i, 0))

    outs = pl.pallas_call(
        kernel,
        out_shape=out_shape,
        grid_spec=pltpu.PrefetchScalarGridSpec(
            num_scalar_prefetch=0,
            grid=grid,
            in_specs=in_specs,
            out_specs=out_specs,
            scratch_shapes=scratch_shapes),
        compiler_params=compiler_params,
    )(x2d, w_t, b2d)

    if return_logits:
        logits2d, ids2d = outs
    else:
        ids2d = outs

    # TODO(synk): torch .squeeze() also drops batch/seq dims when they are 1;
    # we always return (B, S) for ids.
    out_ids = ids2d[:M, 0].reshape(B, S)
    if return_logits:
        return out_ids, logits2d[:M, :V].reshape(B, S, V)
    return out_ids


if __name__ == "__main__":
    # ---- Check 1: exact f32 semantics, return_logits path, no padding. ----
    B, S, L, V = 2, 8, 32, 256
    key = jax.random.PRNGKey(0)
    kx, kw, kb = jax.random.split(key, 3)

    x0 = jax.random.normal(kx, (B, S, L), dtype=jnp.float32)
    # Tied embedding / decoder weight: shape (vocab_size, latent_size).
    weight = jax.random.normal(kw, (V, L), dtype=jnp.float32) * 0.05
    bias = jax.random.normal(kb, (V,), dtype=jnp.float32) * 0.01

    params_f32 = prepare_decoder_params(weight, bias, mxu_dtype=None)
    out_ids, logits = decoder_forward(x0, params_f32, return_logits=True)
    jax.block_until_ready((out_ids, logits))

    ref_logits = x0 @ weight.T + bias
    ref_ids = jnp.argmax(ref_logits, axis=-1)
    assert jnp.allclose(logits, ref_logits, atol=1e-4, rtol=1e-4)
    assert jnp.array_equal(out_ids, ref_ids)
    assert out_ids.shape == (B, S)

    # ---- Check 2: exact f32 semantics, argmax-only path, M & V padding. ----
    B2, S2, L2, V2 = 2, 5, 32, 300          # M=10 -> 16, V=300 -> 384
    kx2, kw2, kb2 = jax.random.split(jax.random.PRNGKey(1), 3)
    x1 = jax.random.normal(kx2, (B2, S2, L2), dtype=jnp.float32)
    w1 = jax.random.normal(kw2, (V2, L2), dtype=jnp.float32) * 0.05
    b1 = jax.random.normal(kb2, (V2,), dtype=jnp.float32) * 0.01

    params1_f32 = prepare_decoder_params(w1, b1, mxu_dtype=None)
    ids1 = jax.block_until_ready(decoder_forward(x1, params1_f32))
    ref_ids1 = jnp.argmax(x1 @ w1.T + b1, axis=-1)
    assert jnp.array_equal(ids1, ref_ids1)
    assert ids1.shape == (B2, S2)

    # ---- Check 3: default bf16 MXU operands (weight stored bf16 once). ----
    params1_bf = prepare_decoder_params(w1, b1)        # bf16 default
    ids1_bf = jax.block_until_ready(decoder_forward(x1, params1_bf))
    x1b = x1.astype(jnp.bfloat16).astype(jnp.float32)
    w1b = w1.astype(jnp.bfloat16).astype(jnp.float32)
    lbf = x1b @ w1b.T + b1
    chosen = jnp.take_along_axis(lbf, ids1_bf[..., None], axis=-1)[..., 0]
    # bf16-operand path: the selected id must attain the (bf16-operand) max
    # to within accumulation-order noise.
    assert jnp.all(chosen >= jnp.max(lbf, axis=-1) - 1e-3)
    assert ids1_bf.shape == (B2, S2)

    print("KERNEL_OK")
</pallas_src>

<mosaic_0001>
module attributes {stable_mosaic.version = 11 : i64} {
  func.func @_decoder_ids_logits_kernel(%arg0: i32, %arg1: i32, %arg2: memref<16x32xf32, #tpu.memory_space<vmem>>, %arg3: memref<32x256xf32, #tpu.memory_space<vmem>>, %arg4: memref<1x256xf32, #tpu.memory_space<vmem>>, %arg5: memref<16x256xf32, #tpu.memory_space<vmem>>, %arg6: memref<16x1xi32, #tpu.memory_space<vmem>>, %arg7: memref<16x128xf32, #tpu.memory_space<vmem>>, %arg8: memref<16x128xi32, #tpu.memory_space<vmem>>) attributes {dimension_semantics = [#tpu.dimension_semantics<parallel>, #tpu.dimension_semantics<arbitrary>], iteration_bounds = array<i64: 1, 1>, scalar_prefetch = 0 : i64, scratch_operands = 2 : i64, tpu.core_type = #tpu.core_type<tc>, window_params = [{transform_indices = @transform_0, window_bounds = array<i64: 16, 32>}, {transform_indices = @transform_1, window_bounds = array<i64: 32, 256>}, {transform_indices = @transform_2, window_bounds = array<i64: 1, 256>}, {transform_indices = @transform_3, window_bounds = array<i64: 16, 256>}, {transform_indices = @transform_4, window_bounds = array<i64: 16, 1>}]} {
    %c0 = arith.constant 0 : index
    %c0_0 = arith.constant 0 : index
    %0 = vector.load %arg2[%c0, %c0_0] : memref<16x32xf32, #tpu.memory_space<vmem>>, vector<16x32xf32>
    %c0_1 = arith.constant 0 : index
    %c0_2 = arith.constant 0 : index
    %1 = vector.load %arg3[%c0_1, %c0_2] : memref<32x256xf32, #tpu.memory_space<vmem>>, vector<32x256xf32>
    %cst = arith.constant dense<0.000000e+00> : vector<16x256xf32>
    %2 = tpu.matmul %0, %1, %cst {dimension_numbers = #tpu.dot_dimension_numbers<[1], [0], [0], [1], [0, 0, 1, 1], [], []>} : vector<16x32xf32>, vector<32x256xf32>, vector<16x256xf32> -> vector<16x256xf32>
    %c0_3 = arith.constant 0 : index
    %c0_4 = arith.constant 0 : index
    %3 = vector.load %arg4[%c0_3, %c0_4] : memref<1x256xf32, #tpu.memory_space<vmem>>, vector<1x256xf32>
    %4 = vector.broadcast %3 : vector<1x256xf32> to vector<16x256xf32>
    %5 = arith.addf %2, %4 : vector<16x256xf32>
    %c0_5 = arith.constant 0 : index
    %c0_6 = arith.constant 0 : index
    %6 = vector.load %arg5[%c0_5, %c0_6] : memref<16x256xf32, #tpu.memory_space<vmem>>, vector<16x256xf32>
    tpu.vector_store %arg5[%c0_5, %c0_6], %5 {strides = array<i32>} : memref<16x256xf32, #tpu.memory_space<vmem>>, vector<16x256xf32>,
    %7 = tpu.iota {dimensions = array<i32: 1>} : vector<16x128xi32>
    %c0_i32 = arith.constant 0 : i32
    %8 = arith.cmpi eq, %arg1, %c0_i32 : i32
    %9 = arith.extui %8 : i1 to i32
    %c0_i32_7 = arith.constant 0 : i32
    %10 = arith.cmpi ne, %9, %c0_i32_7 : i32
    scf.if %10 {
      %cst_19 = arith.constant 0xFF800000 : f32
      %33 = vector.broadcast %cst_19 : f32 to vector<16x128xf32>
      %c0_20 = arith.constant 0 : index
      %c0_21 = arith.constant 0 : index
      %34 = vector.load %arg7[%c0_20, %c0_21] : memref<16x128xf32, #tpu.memory_space<vmem>>, vector<16x128xf32>
      tpu.vector_store %arg7[%c0_20, %c0_21], %33 {strides = array<i32>} : memref<16x128xf32, #tpu.memory_space<vmem>>, vector<16x128xf32>,
      %c0_i32_22 = arith.constant 0 : i32
      %35 = vector.broadcast %c0_i32_22 : i32 to vector<16x128xi32>
      %c0_23 = arith.constant 0 : index
      %c0_24 = arith.constant 0 : index
      %36 = vector.load %arg8[%c0_23, %c0_24] : memref<16x128xi32, #tpu.memory_space<vmem>>, vector<16x128xi32>
      tpu.vector_store %arg8[%c0_23, %c0_24], %35 {strides = array<i32>} : memref<16x128xi32, #tpu.memory_space<vmem>>, vector<16x128xi32>,
    } else {
    }
    %c0_8 = arith.constant 0 : index
    %c0_9 = arith.constant 0 : index
    %11 = vector.load %arg7[%c0_8, %c0_9] : memref<16x128xf32, #tpu.memory_space<vmem>>, vector<16x128xf32>
    %c0_10 = arith.constant 0 : index
    %c0_11 = arith.constant 0 : index
    %12 = vector.load %arg8[%c0_10, %c0_11] : memref<16x128xi32, #tpu.memory_space<vmem>>, vector<16x128xi32>
    %c256_i32 = arith.constant 256 : i32
    %13 = arith.muli %arg1, %c256_i32 : i32
    %14 = vector.extract_strided_slice %5 {offsets = [0, 0], sizes = [16, 128], strides = [1, 1]} : vector<16x256xf32> to vector<16x128xf32>
    %c0_i32_12 = arith.constant 0 : i32
    %15 = arith.addi %13, %c0_i32_12 : i32
    %16 = vector.broadcast %15 : i32 to vector<16x128xi32>
    %17 = arith.addi %7, %16 : vector<16x128xi32>
    %18 = arith.cmpf ogt, %14, %11 : vector<16x128xf32>
    %19 = arith.select %18, %17, %12 : vector<16x128xi1>, vector<16x128xi32>
    %20 = arith.maximumf %11, %14 : vector<16x128xf32>
    %21 = vector.extract_strided_slice %5 {offsets = [0, 128], sizes = [16, 128], strides = [1, 1]} : vector<16x256xf32> to vector<16x128xf32>
    %c128_i32 = arith.constant 128 : i32
    %22 = arith.addi %13, %c128_i32 : i32
    %23 = vector.broadcast %22 : i32 to vector<16x128xi32>
    %24 = arith.addi %7, %23 : vector<16x128xi32>
    %25 = arith.cmpf ogt, %21, %20 : vector<16x128xf32>
    %26 = arith.select %25, %24, %19 : vector<16x128xi1>, vector<16x128xi32>
    %27 = arith.maximumf %20, %21 : vector<16x128xf32>
    %c0_13 = arith.constant 0 : index
    %c0_14 = arith.constant 0 : index
    %28 = vector.load %arg7[%c0_13, %c0_14] : memref<16x128xf32, #tpu.memory_space<vmem>>, vector<16x128xf32>
    tpu.vector_store %arg7[%c0_13, %c0_14], %27 {strides = array<i32>} : memref<16x128xf32, #tpu.memory_space<vmem>>, vector<16x128xf32>,
    %c0_15 = arith.constant 0 : index
    %c0_16 = arith.constant 0 : index
    %29 = vector.load %arg8[%c0_15, %c0_16] : memref<16x128xi32, #tpu.memory_space<vmem>>, vector<16x128xi32>
    tpu.vector_store %arg8[%c0_15, %c0_16], %26 {strides = array<i32>} : memref<16x128xi32, #tpu.memory_space<vmem>>, vector<16x128xi32>,
    %c0_i32_17 = arith.constant 0 : i32
    %30 = arith.cmpi eq, %arg1, %c0_i32_17 : i32
    %31 = arith.extui %30 : i1 to i32
    %c0_i32_18 = arith.constant 0 : i32
    %32 = arith.cmpi ne, %31, %c0_i32_18 : i32
    scf.if %32 {
      %cst_19 = arith.constant dense<0xFF800000> : vector<16xf32>
      %33 = vector.multi_reduction <maximumf>, %27, %cst_19 [1] : vector<16x128xf32> to vector<16xf32>
      %34 = vector.shape_cast %33 : vector<16xf32> to vector<16x1xf32>
      %35 = vector.broadcast %34 : vector<16x1xf32> to vector<16x128xf32>
      %36 = arith.cmpf oeq, %27, %35 : vector<16x128xf32>
      %c1073741824_i32 = arith.constant 1073741824 : i32
      %37 = vector.broadcast %c1073741824_i32 : i32 to vector<16x128xi32>
      %38 = arith.select %36, %26, %37 : vector<16x128xi1>, vector<16x128xi32>
      %cst_20 = arith.constant dense<2147483647> : vector<16xi32>
      %39 = vector.multi_reduction <minsi>, %38, %cst_20 [1] : vector<16x128xi32> to vector<16xi32>
      %40 = vector.shape_cast %39 : vector<16xi32> to vector<16x1xi32>
      %c0_21 = arith.constant 0 : index
      %c0_22 = arith.constant 0 : index
      %41 = vector.load %arg6[%c0_21, %c0_22] : memref<16x1xi32, #tpu.memory_space<vmem>>, vector<16x1xi32>
      tpu.vector_store %arg6[%c0_21, %c0_22], %40 {strides = array<i32>} : memref<16x1xi32, #tpu.memory_space<vmem>>, vector<16x1xi32>,
    } else {
    }
    return
  }
  func.func @transform_0(%arg0: i32, %arg1: i32) -> (i32, i32) {
    %c0_i32 = arith.constant 0 : i32
    %c0_i32_0 = arith.constant 0 : i32
    return %arg0, %c0_i32 : i32, i32
  }
  func.func @transform_1(%arg0: i32, %arg1: i32) -> (i32, i32) {
    %c0_i32 = arith.constant 0 : i32
    %c0_i32_0 = arith.constant 0 : i32
    return %c0_i32, %arg1 : i32, i32
  }
  func.func @transform_2(%arg0: i32, %arg1: i32) -> (i32, i32) {
    %c0_i32 = arith.constant 0 : i32
    %c0_i32_0 = arith.constant 0 : i32
    return %c0_i32, %arg1 : i32, i32
  }
  func.func @transform_3(%arg0: i32, %arg1: i32) -> (i32, i32) {
    %c0_i32 = arith.constant 0 : i32
    return %arg0, %arg1 : i32, i32
  }
  func.func @transform_4(%arg0: i32, %arg1: i32) -> (i32, i32) {
    %c0_i32 = arith.constant 0 : i32
    %c0_i32_0 = arith.constant 0 : i32
    return %arg0, %c0_i32 : i32, i32
  }
}

</mosaic_0001>

<llo_original>
// kernel: tpu_custom_call.1
$region0: #{tpu_custom_call.1}
  #allocation0 [shape = 'u32[]', space=smem, size = 0x4, offset = 0x4, fixed_abs, tag = 'smem constant byte address 0x4 - core index']
  #allocation1 [shape = 'u32[72,128]{1,0:T(1,128)}', space=vmem, size = 0x9000, scoped, tag = 'internal scratch']
  #allocation2 [shape = 'f32[16,128]{1,0:T(8,128)}', space=vmem, size = 0x2000, scoped, tag = 'scratch operand']
  #allocation3 [shape = 's32[16,128]{1,0:T(8,128)}', space=vmem, size = 0x2000, scoped, tag = 'scratch operand']
  %s0 = inlined_call_operand.hbm [shape: f32[16,32], index: 0, kind: input, shape index: {}]
  %s1 = inlined_call_operand.hbm [shape: f32[32,256], index: 1, kind: input, shape index: {}]
  %s2 = inlined_call_operand.hbm [shape: f32[1,256], index: 2, kind: input, shape index: {}]
  %s3 = inlined_call_operand.hbm [shape: f32[16,256], index: 3, kind: output, shape index: {0}]
  %s4 = inlined_call_operand.vmem [shape: s32[16,1], index: 4, kind: output, shape index: {1}]
  %5 = xla_tuple %s3, %s4
  %s6 = sld [smem:[#allocation0]]
  $region50: #{tpu_custom_call.1} parent=0
    _
  %s8 = ssub.s32 1, %s6
  %s9 = scalar_select 0, %s8, %s6
  $region1: #{tpu_custom_call.1} parent=0
    #allocation4 [shape = 'u8[8192]{0}', space=vmem, size = 0x2000, scoped, tag = 'input window, operand 0, single buffered']
    #allocation5 [shape = 's32[1]{0}', space=sflag, size = 0x4, scoped, tag = 'scoped memory for tpu_custom_call.1']
    #allocation6 [shape = 's32[1]{0}', space=sflag, size = 0x4, scoped, tag = 'scoped memory for tpu_custom_call.1']
    #allocation7 [shape = 'u8[32768]{0}', space=vmem, size = 0x8000, scoped, tag = 'input window, operand 1, single buffered']
    #allocation8 [shape = 's32[1]{0}', space=sflag, size = 0x4, scoped, tag = 'scoped memory for tpu_custom_call.1']
    #allocation9 [shape = 'u8[1024]{0}', space=vmem, size = 0x400, scoped, tag = 'input window, operand 2, single buffered']
    #allocation10 [shape = 'u8[16384]{0}', space=vmem, size = 0x4000, scoped, tag = 'output window, operand 0, single buffered']
    %10 = vsyncpa [#allocation5], 0
    %11 = vsyncpa [#allocation8], 0
    %12 = vsyncpa [#allocation6], 0
    // Predicated region
    $region2: #{tpu_custom_call.1} parent=1 // pred_check
      _
    $region3: #{tpu_custom_call.1} parent=1 // pred_check_branch
      %14 = sbr.rel (0) target = $region5
    $region4: #{tpu_custom_call.1} parent=1 // pred_region
      %16 = vsyncadd [#allocation5], 0
      %s17 = sshll.u32 %s0, 4
      %s18 = int_to_ptr.hbm [resolvable:$true] %s17
      %s19 = sshll.u32 [#allocation4], 4
      %s20 = int_to_ptr.vmem [resolvable:$true] %s19
      %25 = dma.hbm_to_vmem [thread:$0]  %s18, 256, %s20, [#allocation5], 128, 128, 8
    $region5: #{tpu_custom_call.1} parent=1 // pred_fallthru
      _
    // Predicated region
    $region6: #{tpu_custom_call.1} parent=1 // pred_check
      _
    $region7: #{tpu_custom_call.1} parent=1 // pred_check_branch
      %27 = sbr.rel (0) target = $region9
    $region8: #{tpu_custom_call.1} parent=1 // pred_region
      %29 = vsyncadd [#allocation8], 0
      %s30 = sshll.u32 %s1, 4
      %s31 = int_to_ptr.hbm [resolvable:$true] %s30
      %s32 = sshll.u32 [#allocation7], 4
      %s33 = int_to_ptr.vmem [resolvable:$true] %s32
      %38 = dma.hbm_to_vmem [thread:$0]  %s31, 1024, %s33, [#allocation8], 256, 256, 16
    $region9: #{tpu_custom_call.1} parent=1 // pred_fallthru
      _
    // Predicated region
    $region10: #{tpu_custom_call.1} parent=1 // pred_check
      _
    $region11: #{tpu_custom_call.1} parent=1 // pred_check_branch
      %40 = sbr.rel (0) target = $region13
    $region12: #{tpu_custom_call.1} parent=1 // pred_region
      %42 = vsyncadd [#allocation8], 0
      %s44 = sshll.u32 %s2, 4
      %s45 = int_to_ptr.hbm [resolvable:$true] %s44
      %s46 = sshll.u32 [#allocation9], 4
      %s47 = int_to_ptr.vmem [resolvable:$true] %s46
      %49 = dma.hbm_to_vmem [thread:$0]  %s45, 32, %s47, [#allocation8]
    $region13: #{tpu_custom_call.1} parent=1 // pred_fallthru
      _
    // Predicated region
    $region14: #{tpu_custom_call.1} parent=1 // pred_check
      _
    $region15: #{tpu_custom_call.1} parent=1 // pred_check_branch
      %51 = sbr.rel (0) target = $region17
    $region16: #{tpu_custom_call.1} parent=1 // pred_region
      %53 = dma.done [#allocation5], 256
    $region17: #{tpu_custom_call.1} parent=1 // pred_fallthru
      _
    // Predicated region
    $region18: #{tpu_custom_call.1} parent=1 // pred_check
      _
    $region19: #{tpu_custom_call.1} parent=1 // pred_check_branch
      %55 = sbr.rel (0) target = $region21
    $region20: #{tpu_custom_call.1} parent=1 // pred_region
      %57 = dma.done [#allocation8], 1024
    $region21: #{tpu_custom_call.1} parent=1 // pred_fallthru
      _
    // Predicated region
    $region22: #{tpu_custom_call.1} parent=1 // pred_check
      _
    $region23: #{tpu_custom_call.1} parent=1 // pred_check_branch
      %59 = sbr.rel (0) target = $region25
    $region24: #{tpu_custom_call.1} parent=1 // pred_region
      %61 = dma.done [#allocation8], 32
    $region25: #{tpu_custom_call.1} parent=1 // pred_fallthru
      _
    %v62 = vld [vmem:[#allocation4] sm:$0xff]
    %v63 = vld [vmem:[#allocation4 + $0x8] sm:$0xff]
    %v64 = vld [vmem:[#allocation7] sm:$0xff]
    %v65 = vld [vmem:[#allocation7 + $0x8] sm:$0xff]
    %v66 = vld [vmem:[#allocation7 + $0x10] sm:$0xff]
    %v67 = vld [vmem:[#allocation7 + $0x18] sm:$0xff]
    %v68 = vld [vmem:[#allocation7 + $0x20] sm:$0xff]
    %v69 = vld [vmem:[#allocation7 + $0x28] sm:$0xff]
    %v70 = vld [vmem:[#allocation7 + $0x30] sm:$0xff]
    %v71 = vld [vmem:[#allocation7 + $0x38] sm:$0xff]
    %v72 = vld [vmem:[#allocation9] sm:$0x3]
    %v74 = vperm.slane %v72, 0
    %v75 = vperm.slane %v72, 1
    %vm78 = vcmask 261120
    %v80 = vsel %vm78, %v62, 0
    %v83 = vsel %vm78, %v63, 0
    %85 = vmatpush.msra.mxu0 0.0
    %86 = vmatpush.msra.mxu0 0.0
    %87 = vmatpush.msra.mxu0 0.0
    %88 = vmatpush.msra.mxu0 0.0
    %89 = vmatpush.msra.mxu0 0.0
    %90 = vmatpush.msra.mxu0 0.0
    %91 = vmatpush.msra.mxu0 0.0
    %92 = vmatpush.msra.mxu0 0.0
    %93 = vmatpush.msra.mxu0 0.0
    %94 = vmatpush.msra.mxu0 0.0
    %95 = vmatpush.msra.mxu0 0.0
    %96 = vmatpush.msra.mxu0 0.0
    %97 = vmatpush.msra.mxu0 %v70
    %98 = vmatpush.msra.mxu0 %v68
    %99 = vmatpush.msra.mxu0 %v66
    %100 = vmatpush.msra.mxu0 %v64
    %101 = vmatmul.f32.gmra.mxu0 %v80
    %v102 = vpop.f32.mrf.mxu0
    %v103 = vadd.f32 %v74, %v102
    %104 = vmatmul.f32.gmra.mxu0 %v83
    %v105 = vpop.f32.mrf.mxu0
    %v106 = vadd.f32 %v74, %v105
    %107 = vdwg.mxu0
    %108 = vmatpush.msra.mxu0 0.0
    %109 = vmatpush.msra.mxu0 0.0
    %110 = vmatpush.msra.mxu0 0.0
    %111 = vmatpush.msra.mxu0 0.0
    %112 = vmatpush.msra.mxu0 0.0
    %113 = vmatpush.msra.mxu0 0.0
    %114 = vmatpush.msra.mxu0 0.0
    %115 = vmatpush.msra.mxu0 0.0
    %116 = vmatpush.msra.mxu0 0.0
    %117 = vmatpush.msra.mxu0 0.0
    %118 = vmatpush.msra.mxu0 0.0
    %119 = vmatpush.msra.mxu0 0.0
    %120 = vmatpush.msra.mxu0 %v71
    %121 = vmatpush.msra.mxu0 %v69
    %122 = vmatpush.msra.mxu0 %v67
    %123 = vmatpush.msra.mxu0 %v65
    %124 = vmatmul.f32.gmra.mxu0 %v80
    %v125 = vpop.f32.mrf.mxu0
    %v126 = vadd.f32 %v75, %v125
    %127 = vmatmul.f32.gmra.mxu0 %v83
    %v128 = vpop.f32.mrf.mxu0
    %v129 = vadd.f32 %v75, %v128
    %130 = vdwg.mxu0
    %131 = vst [vmem:[#allocation10] sm:$0xff] %v103
    %132 = vst [vmem:[#allocation10 + $0x8] sm:$0xff] %v126
    %133 = vst [vmem:[#allocation10 + $0x10] sm:$0xff] %v106
    %134 = vst [vmem:[#allocation10 + $0x18] sm:$0xff] %v129
    %v135 = vlaneseq
    %v136 = vand.u32 %v135, 127
    %p137 = scmp.eq.s32.totalorder 0, 0
    // Predicated region
    $region26: #{tpu_custom_call.1} parent=1 // pred_check
      %p138 = pneg %p137
    $region27: #{tpu_custom_call.1} parent=1 // pred_check_branch
      %140 = sbr.rel (%p138) target = $region29
    $region28: #{tpu_custom_call.1} parent=1 // pred_region
      %141 = vst [vmem:[#allocation2] sm:$0xff] -inf
      %142 = vst [vmem:[#allocation2 + $0x8] sm:$0xff] -inf
      %143 = vst [vmem:[#allocation3] sm:$0xff] 0
      %144 = vst [vmem:[#allocation3 + $0x8] sm:$0xff] 0
    $region29: #{tpu_custom_call.1} parent=1 // pred_fallthru
      _
    %v145 = vld [vmem:[#allocation2] sm:$0xff]
    %v146 = vld [vmem:[#allocation2 + $0x8] sm:$0xff]
    %v147 = vld [vmem:[#allocation3] sm:$0xff]
    %v148 = vld [vmem:[#allocation3 + $0x8] sm:$0xff]
    %s149 = smul.u32 0, 256
    %v150 = vstv %s149
    %v151 = vadd.s32 %v136, %v150
    %vm152 = vcmp.gt.f32.partialorder %v103, %v145
    %vm153 = vcmp.gt.f32.partialorder %v106, %v146
    %v154 = vsel %vm152, %v151, %v147
    %v155 = vsel %vm153, %v151, %v148
    %v156 = vmax.f32 %v145, %v103
    %v157 = vmax.f32 %v146, %v106
    %s158 = sadd.s32 %s149, 128
    %v159 = vstv %s158
    %v160 = vadd.s32 %v136, %v159
    %vm161 = vcmp.gt.f32.partialorder %v126, %v156
    %vm162 = vcmp.gt.f32.partialorder %v129, %v157
    %v163 = vsel %vm161, %v160, %v154
    %v164 = vsel %vm162, %v160, %v155
    %v165 = vmax.f32 %v156, %v126
    %v166 = vmax.f32 %v157, %v129
    %167 = vst [vmem:[#allocation2] sm:$0xff] %v165
    %168 = vst [vmem:[#allocation2 + $0x8] sm:$0xff] %v166
    %169 = vst [vmem:[#allocation3] sm:$0xff] %v163
    %170 = vst [vmem:[#allocation3 + $0x8] sm:$0xff] %v164
    // Predicated region
    $region30: #{tpu_custom_call.1} parent=1 // pred_check
      %p171 = pneg %p137
    $region31: #{tpu_custom_call.1} parent=1 // pred_check_branch
      %173 = sbr.rel (%p171) target = $region33
    $region32: #{tpu_custom_call.1} parent=1 // pred_region
      %174 = vmax.xlane.f32.xlu0 %v165
      %v175 = vpop.xlane.xlu0 %174
      %176 = vmax.xlane.f32.xlu0 %v166
      %v177 = vpop.xlane.xlu0 %176
      %vm178 = vcmp.eq.f32.partialorder %v165, %v175
      %vm179 = vcmp.eq.f32.partialorder %v166, %v177
      %v180 = vsel %vm178, %v163, 1073741824
      %v181 = vsel %vm179, %v164, 1073741824
      %v182 = vand.u32 %v180, 65535
      %v183 = vshra.s32 %v180, 16
      %v184 = vcvt.s32.f32 %v182
      %v185 = vcvt.s32.f32 %v183
      %186 = vmin.xlane.f32.xlu0 %v185
      %v187 = vpop.xlane.xlu0 %186
      %vm188 = vcmp.eq.f32.partialorder %v185, %v187
      %v189 = vsel %vm188, %v184, inf
      %190 = vmin.xlane.f32.xlu0 %v189
      %v191 = vpop.xlane.xlu0 %190
      %v192 = vcvt.f32.s32 %v191
      %v193 = vcvt.f32.s32 %v187
      %v194 = vshll.u32 %v193, 16
      %v195 = vadd.s32 %v194, %v192
      %v196 = vand.u32 %v181, 65535
      %v197 = vshra.s32 %v181, 16
      %v198 = vcvt.s32.f32 %v196
      %v199 = vcvt.s32.f32 %v197
      %200 = vmin.xlane.f32.xlu0 %v199
      %v201 = vpop.xlane.xlu0 %200
      %vm202 = vcmp.eq.f32.partialorder %v199, %v201
      %v203 = vsel %vm202, %v198, inf
      %204 = vmin.xlane.f32.xlu0 %v203
      %v205 = vpop.xlane.xlu0 %204
      %v206 = vcvt.f32.s32 %v205
      %v207 = vcvt.f32.s32 %v201
      %v208 = vshll.u32 %v207, 16
      %v209 = vadd.s32 %v208, %v206
      %vm210 = vcmask 7168
      %211 = vst.msk [vmem:[%s4] sm:$0xff] %vm210, %v195
      %212 = vst.msk [vmem:[%s4 + $0x8] sm:$0xff] %vm210, %v209
    $region33: #{tpu_custom_call.1} parent=1 // pred_fallthru
      _
    // Predicated region
    $region34: #{tpu_custom_call.1} parent=1 // pred_check
      _
    $region35: #{tpu_custom_call.1} parent=1 // pred_check_branch
      %214 = sbr.rel (0) target = $region37
    $region36: #{tpu_custom_call.1} parent=1 // pred_region
      %216 = vsyncadd [#allocation6], 0
      %s217 = sshll.u32 [#allocation10], 4
      %s218 = int_to_ptr.vmem [resolvable:$true] %s217
      %s219 = sshll.u32 %s3, 4
      %s220 = int_to_ptr.hbm [resolvable:$true] %s219
      %225 = dma.vmem_to_hbm [thread:$0]  %s218, 512, %s220, [#allocation6], 256, 256, 16
    $region37: #{tpu_custom_call.1} parent=1 // pred_fallthru
      _
    // Predicated region
    $region38: #{tpu_custom_call.1} parent=1 // pred_check
      _
    $region39: #{tpu_custom_call.1} parent=1 // pred_check_branch
      %227 = sbr.rel (0) target = $region41
    $region40: #{tpu_custom_call.1} parent=1 // pred_region
      _
    $region41: #{tpu_custom_call.1} parent=1 // pred_fallthru
      _
    // Predicated region
    $region42: #{tpu_custom_call.1} parent=1 // pred_check
      _
    $region43: #{tpu_custom_call.1} parent=1 // pred_check_branch
      %229 = sbr.rel (0) target = $region45
    $region44: #{tpu_custom_call.1} parent=1 // pred_region
      %231 = dma.done [#allocation6], 512
    $region45: #{tpu_custom_call.1} parent=1 // pred_fallthru
      _
    // Predicated region
    $region46: #{tpu_custom_call.1} parent=1 // pred_check
      _
    $region47: #{tpu_custom_call.1} parent=1 // pred_check_branch
      %233 = sbr.rel (0) target = $region49
    $region48: #{tpu_custom_call.1} parent=1 // pred_region
      _
    $region49: #{tpu_custom_call.1} parent=1 // pred_fallthru
      _
    %234 = vsyncpa [#allocation5], 1
    %235 = vsyncpa [#allocation8], 1
    %236 = vsyncpa [#allocation6], 1

</llo_original>
